<compile_context>
chip_gen: v7x
topology: tpu7x:2x2x1
jax: 0.10.0
libtpu: 0.0.40
codegen_flags: <defaults>
</compile_context>

<pallas_src>
import functools

import jax
import jax.numpy as jnp
from jax import lax
from jax.experimental import pallas as pl
from jax.experimental.pallas import tpu as pltpu


def _kl_loss_kernel(pred_ref, label_ref, out_ref, *, batch_size, tile_b):
    """One batch tile -> one (1, 8, 128) partial-sum block (scalar at [0,0,0])."""
    i = pl.program_id(0)

    # Remainder masking: the last tile may extend past the batch.  Out-of-bounds
    # reads are garbage (possibly NaN/Inf bit patterns), so zero those rows
    # BEFORE any exp/log.  A zeroed row then contributes exactly 0 to the loss:
    # z2 = 0, s1 = s2 = C (sum of exact ones), and
    # (logp2 - logp1) = (0 - log C) - (0 - log C) = 0 with the identical
    # computed log value, so p2 * 0 = 0 exactly.
    row = i * tile_b + lax.broadcasted_iota(jnp.int32, (tile_b, 1), 0)
    valid = row < batch_size

    pred = jnp.where(valid, pred_ref[...].astype(jnp.float32), 0.0)
    lab = jnp.where(valid, label_ref[...].astype(jnp.float32) * 10.0, 0.0)

    # log_softmax(prediction) along the class (lane) axis.
    z1 = pred - jnp.max(pred, axis=1, keepdims=True)
    logp1 = z1 - jnp.log(jnp.sum(jnp.exp(z1), axis=1, keepdims=True))

    # softmax(10 * label), fused into the KL sum without materializing
    # p2 / logp2 separately:  p2 = e2 * (1/s2),  logp2 = z2 - log(s2).
    z2 = lab - jnp.max(lab, axis=1, keepdims=True)
    e2 = jnp.exp(z2)
    s2 = jnp.sum(e2, axis=1, keepdims=True)
    inv_s2 = pl.reciprocal(s2)        # exact (approx=False): feeds the loss value
    log_s2 = jnp.log(s2)

    # Per-element contribution; summing the whole (tile_b, C) matrix is a
    # streaming VPU accumulation plus a single cross-lane/sublane fold.
    contrib = (e2 * inv_s2) * (z2 - log_s2 - logp1)
    tile_sum = jnp.sum(contrib)

    # Lane-dense partial-sum output block: scalar at [0, 0, 0], zeros elsewhere.
    sub = lax.broadcasted_iota(jnp.int32, (1, 8, 128), 1)
    lane = lax.broadcasted_iota(jnp.int32, (1, 8, 128), 2)
    out_ref[...] = jnp.where((sub == 0) & (lane == 0), tile_sum, jnp.float32(0.0))


def _choose_tile_b(B, C, *, max_tile=4096):
    # VMEM footprint model: any f32 buffer whose last dim <= 128 is padded to
    # 128 lanes, so each live (tb, C) / (tb, 1) buffer costs
    # round_up(C, 128) * 4 bytes per row.  Budget: 2 inputs x 2 pipeline
    # buffers + ~10 live f32/i32 temporaries under ~28 MiB (inside the 48 MiB
    # scoped-VMEM request; safe on v5e/v6e/v7x).
    lane_bytes = ((C + 127) // 128) * 128 * 4
    live_buffers = 4 + 10
    budget = 28 * 1024 * 1024
    tb = budget // (lane_bytes * live_buffers)
    tb = max(8, min(max_tile, (tb // 8) * 8))
    if B <= tb:
        return B          # single block == full array dims (always legal)
    return tb


def kl_loss(prediction, label, *, tile_b=None):
    """prediction, label: (B, C). Returns scalar f32 loss (matches the module).

    Inputs may be f32 or bf16 (bf16 halves HBM traffic); math is done in f32.
    """
    assert prediction.shape == label.shape and prediction.ndim == 2
    B, C = prediction.shape

    if tile_b is None:
        tb = _choose_tile_b(B, C)
    else:
        tb = B if tile_b >= B else max(8, (tile_b // 8) * 8)

    num_tiles = pl.cdiv(B, tb)
    kernel = functools.partial(_kl_loss_kernel, batch_size=B, tile_b=tb)

    itemsize_p = jnp.dtype(prediction.dtype).itemsize
    itemsize_l = jnp.dtype(label.dtype).itemsize
    cost = pl.CostEstimate(
        flops=14 * B * C,
        transcendentals=2 * B * C + 3 * B,
        bytes_accessed=B * C * (itemsize_p + itemsize_l) + num_tiles * 8 * 128 * 4,
    )

    partials = pl.pallas_call(
        kernel,
        out_shape=jax.ShapeDtypeStruct((num_tiles, 8, 128), jnp.float32),
        grid_spec=pltpu.PrefetchScalarGridSpec(
            num_scalar_prefetch=0,
            grid=(num_tiles,),
            in_specs=[
                pl.BlockSpec((tb, C), lambda i: (i, 0)),
                pl.BlockSpec((tb, C), lambda i: (i, 0)),
            ],
            # One distinct lane-dense partial per tile -> no cross-step
            # accumulator, grid axis can be scheduled fully in parallel
            # (uses both TensorCores on v7x).
            out_specs=pl.BlockSpec((1, 8, 128), lambda i: (i, 0, 0)),
        ),
        compiler_params=pltpu.CompilerParams(
            dimension_semantics=("parallel",),
            vmem_limit_bytes=48 * 1024 * 1024,
        ),
        cost_estimate=cost,
    )(prediction, label)

    # Tiny reduction over per-tile partials (all non-[_,0,0] entries are 0).
    return jnp.sum(partials)


def _reference(prediction, label):
    # Pure-JAX reference mirroring the PyTorch module.
    logp1 = jax.nn.log_softmax(prediction.astype(jnp.float32), axis=1)
    p2 = jax.nn.softmax(label.astype(jnp.float32) * 10.0, axis=1)
    logp2 = jnp.log(p2)
    return jnp.sum(p2 * (logp2 - logp1))


if __name__ == "__main__":
    key = jax.random.PRNGKey(0)
    k1, k2, k3, k4 = jax.random.split(key, 4)

    # Small shapes consistent with the module: (batch, classes).
    B, C = 4, 32
    prediction = jax.random.normal(k1, (B, C), dtype=jnp.float32)
    label = jax.random.normal(k2, (B, C), dtype=jnp.float32)
    loss = jax.block_until_ready(kl_loss(prediction, label))
    ref = jax.block_until_ready(_reference(prediction, label))
    assert jnp.allclose(loss, ref, rtol=1e-5, atol=1e-5), (loss, ref)

    # Second check: multi-tile grid + in-kernel remainder masking path.
    B2 = 37
    p2_in = jax.random.normal(k3, (B2, C), dtype=jnp.float32)
    l2_in = jax.random.normal(k4, (B2, C), dtype=jnp.float32)
    loss2 = jax.block_until_ready(kl_loss(p2_in, l2_in, tile_b=16))
    ref2 = jax.block_until_ready(_reference(p2_in, l2_in))
    assert jnp.allclose(loss2, ref2, rtol=1e-5, atol=1e-5), (loss2, ref2)

    print("KERNEL_OK")
</pallas_src>

<mosaic_0001>
module attributes {stable_mosaic.version = 11 : i64} {
  func.func @_kl_loss_kernel(%arg0: i32, %arg1: memref<4x32xf32, #tpu.memory_space<vmem>>, %arg2: memref<4x32xf32, #tpu.memory_space<vmem>>, %arg3: memref<1x8x128xf32, #tpu.memory_space<vmem>>) attributes {dimension_semantics = [#tpu.dimension_semantics<parallel>], iteration_bounds = array<i64: 1>, scalar_prefetch = 0 : i64, scratch_operands = 0 : i64, tpu.core_type = #tpu.core_type<tc>, window_params = [{transform_indices = @transform_0, window_bounds = array<i64: 4, 32>}, {transform_indices = @transform_1, window_bounds = array<i64: 4, 32>}, {transform_indices = @transform_2, window_bounds = array<i64: 1, 8, 128>}]} {
    %c4_i32 = arith.constant 4 : i32
    %0 = arith.muli %arg0, %c4_i32 : i32
    %1 = tpu.iota {dimensions = array<i32: 0>} : vector<4x1xi32>
    %2 = vector.broadcast %0 : i32 to vector<4x1xi32>
    %3 = arith.addi %2, %1 : vector<4x1xi32>
    %c4_i32_0 = arith.constant 4 : i32
    %4 = vector.broadcast %c4_i32_0 : i32 to vector<4x1xi32>
    %5 = arith.cmpi slt, %3, %4 : vector<4x1xi32>
    %c0 = arith.constant 0 : index
    %c0_1 = arith.constant 0 : index
    %6 = vector.load %arg1[%c0, %c0_1] : memref<4x32xf32, #tpu.memory_space<vmem>>, vector<4x32xf32>
    %cst = arith.constant 0.000000e+00 : f32
    %7 = vector.shape_cast %5 : vector<4x1xi1> to vector<4x1xi1>
    %8 = vector.broadcast %7 : vector<4x1xi1> to vector<4x32xi1>
    %9 = vector.broadcast %cst : f32 to vector<4x32xf32>
    %10 = arith.select %8, %6, %9 : vector<4x32xi1>, vector<4x32xf32>
    %c0_2 = arith.constant 0 : index
    %c0_3 = arith.constant 0 : index
    %11 = vector.load %arg2[%c0_2, %c0_3] : memref<4x32xf32, #tpu.memory_space<vmem>>, vector<4x32xf32>
    %cst_4 = arith.constant 1.000000e+01 : f32
    %12 = vector.broadcast %cst_4 : f32 to vector<4x32xf32>
    %13 = arith.mulf %11, %12 : vector<4x32xf32>
    %cst_5 = arith.constant 0.000000e+00 : f32
    %14 = vector.shape_cast %5 : vector<4x1xi1> to vector<4x1xi1>
    %15 = vector.broadcast %14 : vector<4x1xi1> to vector<4x32xi1>
    %16 = vector.broadcast %cst_5 : f32 to vector<4x32xf32>
    %17 = arith.select %15, %13, %16 : vector<4x32xi1>, vector<4x32xf32>
    %cst_6 = arith.constant dense<0xFF800000> : vector<4xf32>
    %18 = vector.multi_reduction <maximumf>, %10, %cst_6 [1] : vector<4x32xf32> to vector<4xf32>
    %19 = vector.shape_cast %18 : vector<4xf32> to vector<4x1xf32>
    %20 = vector.broadcast %19 : vector<4x1xf32> to vector<4x32xf32>
    %21 = arith.subf %10, %20 : vector<4x32xf32>
    %22 = math.exp %21 : vector<4x32xf32>
    %cst_7 = arith.constant dense<0.000000e+00> : vector<4xf32>
    %23 = vector.multi_reduction <add>, %22, %cst_7 [1] : vector<4x32xf32> to vector<4xf32>
    %24 = vector.shape_cast %23 : vector<4xf32> to vector<4x1xf32>
    %25 = math.log %24 : vector<4x1xf32>
    %26 = vector.broadcast %25 : vector<4x1xf32> to vector<4x32xf32>
    %27 = arith.subf %21, %26 : vector<4x32xf32>
    %cst_8 = arith.constant dense<0xFF800000> : vector<4xf32>
    %28 = vector.multi_reduction <maximumf>, %17, %cst_8 [1] : vector<4x32xf32> to vector<4xf32>
    %29 = vector.shape_cast %28 : vector<4xf32> to vector<4x1xf32>
    %30 = vector.broadcast %29 : vector<4x1xf32> to vector<4x32xf32>
    %31 = arith.subf %17, %30 : vector<4x32xf32>
    %32 = math.exp %31 : vector<4x32xf32>
    %cst_9 = arith.constant dense<0.000000e+00> : vector<4xf32>
    %33 = vector.multi_reduction <add>, %32, %cst_9 [1] : vector<4x32xf32> to vector<4xf32>
    %34 = vector.shape_cast %33 : vector<4xf32> to vector<4x1xf32>
    %35 = tpu.reciprocal %34 : vector<4x1xf32> -> vector<4x1xf32>
    %36 = math.log %34 : vector<4x1xf32>
    %37 = vector.broadcast %35 : vector<4x1xf32> to vector<4x32xf32>
    %38 = arith.mulf %32, %37 : vector<4x32xf32>
    %39 = vector.broadcast %36 : vector<4x1xf32> to vector<4x32xf32>
    %40 = arith.subf %31, %39 : vector<4x32xf32>
    %41 = arith.subf %40, %27 : vector<4x32xf32>
    %42 = arith.mulf %38, %41 : vector<4x32xf32>
    %43 = vector.shape_cast %42 : vector<4x32xf32> to vector<1x4x32xf32>
    %cst_10 = arith.constant dense<0.000000e+00> : vector<1xf32>
    %44 = vector.multi_reduction <add>, %43, %cst_10 [1, 2] : vector<1x4x32xf32> to vector<1xf32>
    %45 = vector.shape_cast %44 : vector<1xf32> to vector<1x1x1xf32>
    %46 = vector.extract %45[0, 0, 0] : f32 from vector<1x1x1xf32>
    %47 = tpu.iota {dimensions = array<i32: 1>} : vector<1x8x128xi32>
    %48 = tpu.iota {dimensions = array<i32: 2>} : vector<1x8x128xi32>
    %c0_i32 = arith.constant 0 : i32
    %49 = vector.broadcast %c0_i32 : i32 to vector<1x8x128xi32>
    %50 = arith.cmpi eq, %47, %49 : vector<1x8x128xi32>
    %c0_i32_11 = arith.constant 0 : i32
    %51 = vector.broadcast %c0_i32_11 : i32 to vector<1x8x128xi32>
    %52 = arith.cmpi eq, %48, %51 : vector<1x8x128xi32>
    %53 = arith.andi %50, %52 : vector<1x8x128xi1>
    %cst_12 = arith.constant 0.000000e+00 : f32
    %54 = vector.broadcast %46 : f32 to vector<1x8x128xf32>
    %55 = vector.broadcast %cst_12 : f32 to vector<1x8x128xf32>
    %56 = arith.select %53, %54, %55 : vector<1x8x128xi1>, vector<1x8x128xf32>
    %c0_13 = arith.constant 0 : index
    %c0_14 = arith.constant 0 : index
    %c0_15 = arith.constant 0 : index
    %57 = vector.load %arg3[%c0_13, %c0_14, %c0_15] : memref<1x8x128xf32, #tpu.memory_space<vmem>>, vector<1x8x128xf32>
    tpu.vector_store %arg3[%c0_13, %c0_14, %c0_15], %56 {strides = array<i32>} : memref<1x8x128xf32, #tpu.memory_space<vmem>>, vector<1x8x128xf32>,
    return
  }
  func.func @transform_0(%arg0: i32) -> (i32, i32) {
    %c0_i32 = arith.constant 0 : i32
    %c0_i32_0 = arith.constant 0 : i32
    return %arg0, %c0_i32 : i32, i32
  }
  func.func @transform_1(%arg0: i32) -> (i32, i32) {
    %c0_i32 = arith.constant 0 : i32
    %c0_i32_0 = arith.constant 0 : i32
    return %arg0, %c0_i32 : i32, i32
  }
  func.func @transform_2(%arg0: i32) -> (i32, i32, i32) {
    %c0_i32 = arith.constant 0 : i32
    %c0_i32_0 = arith.constant 0 : i32
    %c0_i32_1 = arith.constant 0 : i32
    return %arg0, %c0_i32, %c0_i32_0 : i32, i32, i32
  }
}

</mosaic_0001>

<llo_original>
// kernel: tpu_custom_call.1
$region0: #{tpu_custom_call.1}
  #allocation0 [shape = 'u32[]', space=smem, size = 0x4, offset = 0x4, fixed_abs, tag = 'smem constant byte address 0x4 - core index']
  #allocation1 [shape = 'u32[144,128]{1,0:T(1,128)}', space=vmem, size = 0x12000, scoped, tag = 'internal scratch']
  %s0 = inlined_call_operand.hbm [shape: f32[4,32], index: 0, kind: input, shape index: {}]
  %s1 = inlined_call_operand.hbm [shape: f32[4,32], index: 1, kind: input, shape index: {}]
  %s2 = inlined_call_operand.hbm [shape: f32[1,8,128], index: 2, kind: output, shape index: {}]
  %s3 = sld [smem:[#allocation0]]
  $region26: #{tpu_custom_call.1} parent=0
    _
  %s5 = ssub.s32 1, %s3
  %s6 = scalar_select 0, %s5, %s3
  $region1: #{tpu_custom_call.1} parent=0
    #allocation2 [shape = 'u8[2048]{0}', space=vmem, size = 0x800, scoped, tag = 'input window, operand 0, single buffered']
    #allocation3 [shape = 's32[1]{0}', space=sflag, size = 0x4, scoped, tag = 'scoped memory for tpu_custom_call.1']
    #allocation4 [shape = 's32[1]{0}', space=sflag, size = 0x4, scoped, tag = 'scoped memory for tpu_custom_call.1']
    #allocation5 [shape = 'u8[2048]{0}', space=vmem, size = 0x800, scoped, tag = 'input window, operand 1, single buffered']
    #allocation6 [shape = 's32[1]{0}', space=sflag, size = 0x4, scoped, tag = 'scoped memory for tpu_custom_call.1']
    #allocation7 [shape = 'u8[4096]{0}', space=vmem, size = 0x1000, scoped, tag = 'output window, operand 0, single buffered']
    %7 = vsyncpa [#allocation3], 0
    %8 = vsyncpa [#allocation6], 0
    %9 = vsyncpa [#allocation4], 0
    // Predicated region
    $region2: #{tpu_custom_call.1} parent=1 // pred_check
      _
    $region3: #{tpu_custom_call.1} parent=1 // pred_check_branch
      %11 = sbr.rel (0) target = $region5
    $region4: #{tpu_custom_call.1} parent=1 // pred_region
      %s13 = ssub.s32 64, 64
      %14 = vsyncadd [#allocation3], %s13
      %s16 = sshll.u32 [#allocation2], 4
      %s17 = int_to_ptr.vmem [resolvable:$true] %s16
      %19 = dma.hbm_to_vmem [thread:$0]  %s0, 64, %s17, [#allocation3]
    $region5: #{tpu_custom_call.1} parent=1 // pred_fallthru
      _
    // Predicated region
    $region6: #{tpu_custom_call.1} parent=1 // pred_check
      _
    $region7: #{tpu_custom_call.1} parent=1 // pred_check_branch
      %21 = sbr.rel (0) target = $region9
    $region8: #{tpu_custom_call.1} parent=1 // pred_region
      %s23 = ssub.s32 64, 64
      %24 = vsyncadd [#allocation6], %s23
      %s26 = sshll.u32 [#allocation5], 4
      %s27 = int_to_ptr.vmem [resolvable:$true] %s26
      %29 = dma.hbm_to_vmem [thread:$0]  %s1, 64, %s27, [#allocation6]
    $region9: #{tpu_custom_call.1} parent=1 // pred_fallthru
      _
    // Predicated region
    $region10: #{tpu_custom_call.1} parent=1 // pred_check
      _
    $region11: #{tpu_custom_call.1} parent=1 // pred_check_branch
      %31 = sbr.rel (0) target = $region13
    $region12: #{tpu_custom_call.1} parent=1 // pred_region
      %32 = dma.done [#allocation3], 64
    $region13: #{tpu_custom_call.1} parent=1 // pred_fallthru
      _
    // Predicated region
    $region14: #{tpu_custom_call.1} parent=1 // pred_check
      _
    $region15: #{tpu_custom_call.1} parent=1 // pred_check_branch
      %34 = sbr.rel (0) target = $region17
    $region16: #{tpu_custom_call.1} parent=1 // pred_region
      %35 = dma.done [#allocation6], 64
    $region17: #{tpu_custom_call.1} parent=1 // pred_fallthru
      _
    %s36 = smul.u32 0, 4
    %v37 = vlaneseq
    %v38 = vshrl.u32 %v37, 7
    %v39 = vstv %s36
    %v40 = vadd.s32 %v39, %v38
    %vm41 = vcmp.lt.s32.totalorder %v40, 4
    %v42 = vld [vmem:[#allocation2] sm:$0xf]
    %v43 = vsel %vm41, 1, 0
    %vm44 = vcmp.eq.s32.totalorder %v43, 1
    %v45 = vsel %vm44, %v42, 0.0
    %v46 = vld [vmem:[#allocation5] sm:$0xf]
    %v47 = vmul.f32 %v46, 10.0
    %v48 = vsel %vm44, %v47, 0.0
    %vm49 = vcmask 257024
    %v50 = vsel %vm49, %v45, -inf
    %51 = vmax.xlane.f32.xlu0 %v50
    %v52 = vpop.xlane.xlu0 %51
    %v53 = vsub.f32 %v45, %v52
    %v54 = vmul.f32 %v53, 1.442695
    %v55 = vpow.pop %v54
    %v56 = vsel %vm49, %v55, 0.0
    %57 = vadd.xlane.f32.xlu0 %v56
    %v58 = vpop.xlane.xlu0 %57
    %v59 = vlog2.pop %v58
    %v60 = vmul.f32 %v59, 0.6931472
    %v61 = vsub.f32 %v53, %v60
    %v62 = vsel %vm49, %v48, -inf
    %63 = vmax.xlane.f32.xlu0 %v62
    %v64 = vpop.xlane.xlu0 %63
    %v65 = vsub.f32 %v48, %v64
    %v66 = vmul.f32 %v65, 1.442695
    %v67 = vpow.pop %v66
    %v68 = vsel %vm49, %v67, 0.0
    %69 = vadd.xlane.f32.xlu0 %v68
    %v70 = vpop.xlane.xlu0 %69
    %v71 = vrcp.pop %v70
    %v72 = vlog2.pop %v70
    %v73 = vmul.f32 %v72, 0.6931472
    %v74 = vmul.f32 %v67, %v71
    %v75 = vsub.f32 %v65, %v73
    %v76 = vsub.f32 %v75, %v61
    %v77 = vmul.f32 %v74, %v76
    %v78 = vsel %vm49, %v77, 0.0
    %79 = vadd.xlane.f32.xlu0 %v78
    %v80 = vpop.xlane.xlu0 %79
    %v81 = vrot.slane %v80, 4
    %v82 = vadd.f32 %v80, %v81
    %v83 = vrot.slane %v82, 2
    %v84 = vadd.f32 %v82, %v83
    %v85 = vrot.slane %v84, 1
    %v86 = vadd.f32 %v84, %v85
    %s87 = vtos %v86
    %v88 = vlaneseq
    %v89 = vand.u32 %v88, 127
    %vm90 = vcmp.eq.s32.totalorder %v38, 0
    %vm91 = vcmp.eq.s32.totalorder %v89, 0
    %vm92 = vmand %vm90, %vm91
    %v93 = vstv %s87
    %v94 = vsel %vm92, %v93, 0.0
    %95 = vst [vmem:[#allocation7] sm:$0xff] %v94
    // Predicated region
    $region18: #{tpu_custom_call.1} parent=1 // pred_check
      _
    $region19: #{tpu_custom_call.1} parent=1 // pred_check_branch
      %97 = sbr.rel (0) target = $region21
    $region20: #{tpu_custom_call.1} parent=1 // pred_region
      %s99 = ssub.s32 128, 128
      %100 = vsyncadd [#allocation4], %s99
      %s102 = sshll.u32 [#allocation7], 4
      %s103 = int_to_ptr.vmem [resolvable:$true] %s102
      %105 = dma.vmem_to_hbm [thread:$0]  %s103, 128, %s2, [#allocation4]
    $region21: #{tpu_custom_call.1} parent=1 // pred_fallthru
      _
    // Predicated region
    $region22: #{tpu_custom_call.1} parent=1 // pred_check
      _
    $region23: #{tpu_custom_call.1} parent=1 // pred_check_branch
      %107 = sbr.rel (0) target = $region25
    $region24: #{tpu_custom_call.1} parent=1 // pred_region
      %108 = dma.done [#allocation4], 128
    $region25: #{tpu_custom_call.1} parent=1 // pred_fallthru
      _
    %109 = vsyncpa [#allocation3], 1
    %110 = vsyncpa [#allocation6], 1
    %111 = vsyncpa [#allocation4], 1

</llo_original>
